<compile_context>
chip_gen: v7x
topology: tpu7x:2x2x1
jax: 0.10.0
libtpu: 0.0.40
codegen_flags: <defaults>
</compile_context>

<pallas_src>
import functools

import jax
import jax.numpy as jnp
from jax.experimental import pallas as pl
from jax.experimental.pallas import tpu as pltpu


# --------------------------------------------------------------------------
# helpers
# --------------------------------------------------------------------------
def _cdiv(a, b):
    return -(-a // b)


def _round_up(a, b):
    return _cdiv(a, b) * b


def _vmem_capacity_bytes():
    """Physical VMEM of the attached TPU; conservative fallback (v7x = 64 MiB)."""
    try:
        cap = getattr(pltpu.get_tpu_info(), "vmem_capacity_bytes", None)
        if cap:
            return int(cap)
    except Exception:
        pass
    return 64 << 20


# --------------------------------------------------------------------------
# Kernel: per (batch, pixel-tile) block.
#   x_ref   : (1, C4p, tp)        stacked polyphase input, lane = pixels
#   wc_ref  : (CMP + OCP, C4p)    [Haar+BN folded detail weight ; low-pass weight]
#   bc_ref  : (CMP + OCP, 1)      stacked biases (f32)
#   wht_ref : (OCP, CMP)          BN-folded weight for outconv_bn_relu_H
#   bh_ref  : (OCP, 1)
#   out_ref : (1, OCP, tp)        yL_out + yH_out
# --------------------------------------------------------------------------
def _wtfd_kernel(x_ref, wc_ref, bc_ref, wht_ref, bh_ref, out_ref, *, cmp_rows):
    x = x_ref[0]                                                  # (C4p, tp)

    # One merged matmul for both branches that consume x (detail + low-pass).
    y = jnp.dot(wc_ref[...], x, preferred_element_type=jnp.float32)
    y = jnp.maximum(y + bc_ref[...], 0.0)                         # f32 epilogue

    h = y[:cmp_rows, :].astype(x.dtype)                           # (CMP, tp)
    yl = y[cmp_rows:, :]                                          # (OCP, tp)

    # High-pass output branch on the processed details.
    yh = jnp.dot(wht_ref[...], h, preferred_element_type=jnp.float32)
    yh = jnp.maximum(yh + bh_ref[...], 0.0)                       # (OCP, tp)

    out_ref[0] = (yl + yh).astype(out_ref.dtype)


# --------------------------------------------------------------------------
# Core entry point: stacked polyphase layout (B, 4C, P).
# Channel order on the 4C axis: [x00(c=0..C-1), x01, x10, x11].
# --------------------------------------------------------------------------
def wtfd_forward_stacked(xs, kparams, out_ch, *, out_dtype=None, tile_p_cap=8192):
    wc, bc, wht, bh = kparams["wc"], kparams["bc"], kparams["wht"], kparams["bh"]
    compute_dtype = wc.dtype
    B, C4, P = xs.shape
    C4p = wc.shape[1]
    CMP = wht.shape[1]
    OCP = wht.shape[0]
    if out_dtype is None:
        out_dtype = xs.dtype

    if xs.dtype != compute_dtype:
        xs = xs.astype(compute_dtype)
    if C4p != C4:
        xs = jnp.pad(xs, ((0, 0), (0, C4p - C4), (0, 0)))

    # --- per-generation tile / VMEM budget -------------------------------
    cap = _vmem_capacity_bytes()
    budget = max(16 << 20, (cap * 5) // 8)          # ~40 MiB v7x, ~80 MiB v5e/v6e
    act_isz = jnp.dtype(compute_dtype).itemsize
    out_isz = jnp.dtype(out_dtype).itemsize
    w_bytes = sum(int(a.size) * a.dtype.itemsize for a in (wc, bc, wht, bh))
    per_px = 2 * (C4p * act_isz + OCP * out_isz)    # double-buffered in + out tiles
    avail = budget - 2 * w_bytes - (2 << 20)        # weights double-buffered
    tp = avail // per_px if avail > per_px * 128 else 128
    tp = max(128, min((tp // 128) * 128, tile_p_cap))
    min_p_tiles = 2 if B == 1 else 1                # keep both v7x TCs busy
    tp = min(tp, _round_up(_cdiv(P, min_p_tiles), 128))

    P_pad = _round_up(P, tp)
    if P_pad != P:
        xs = jnp.pad(xs, ((0, 0), (0, 0), (0, P_pad - P)))

    need = per_px * tp + 2 * w_bytes + (4 << 20)
    vmem_limit = int(min(cap - (2 << 20), max(32 << 20, need)))

    grid = (B, P_pad // tp)
    kernel = functools.partial(_wtfd_kernel, cmp_rows=CMP)

    out = pl.pallas_call(
        kernel,
        out_shape=jax.ShapeDtypeStruct((B, OCP, P_pad), out_dtype),
        grid=grid,
        in_specs=[
            pl.BlockSpec((1, C4p, tp), lambda b, p: (b, 0, p)),
            pl.BlockSpec(wc.shape, lambda b, p: (0, 0)),
            pl.BlockSpec(bc.shape, lambda b, p: (0, 0)),
            pl.BlockSpec(wht.shape, lambda b, p: (0, 0)),
            pl.BlockSpec(bh.shape, lambda b, p: (0, 0)),
        ],
        out_specs=pl.BlockSpec((1, OCP, tp), lambda b, p: (b, 0, p)),
        compiler_params=pltpu.CompilerParams(
            dimension_semantics=("parallel", "parallel"),
            vmem_limit_bytes=vmem_limit,
            # Allow XLA to fuse the activation producer (restack) into the call.
            allow_input_fusion=[True, False, False, False, False],
        ),
    )(xs, wc, bc, wht, bh)

    return out[:, :out_ch, :P]


# --------------------------------------------------------------------------
# NCHW convenience wrapper (does the polyphase restack; one fused pass under jit).
# --------------------------------------------------------------------------
def wtfd_forward(x_nchw, kparams, out_ch, *, tile_p_cap=8192):
    B, C, H, W = x_nchw.shape
    assert H % 2 == 0 and W % 2 == 0, "H and W must be even"
    Ho, Wo = H // 2, W // 2
    compute_dtype = kparams["wc"].dtype

    # (B,C,H,W) -> (B, 4C, P); 4C order = [x00, x01, x10, x11] per channel block.
    xs = x_nchw.astype(compute_dtype).reshape(B, C, Ho, 2, Wo, 2)
    xs = jnp.transpose(xs, (0, 3, 5, 1, 2, 4)).reshape(B, 4 * C, Ho * Wo)

    out = wtfd_forward_stacked(xs, kparams, out_ch,
                               out_dtype=x_nchw.dtype, tile_p_cap=tile_p_cap)
    return out.reshape(B, out_ch, Ho, Wo)


# --------------------------------------------------------------------------
# Parameter construction / folding (eval-mode BN + Haar + 0.5 scale + padding)
# --------------------------------------------------------------------------
def make_params(in_ch, out_ch, key):
    """Raw conv + BN parameters (PyTorch-module-like state, eval mode)."""
    ks = jax.random.split(key, 20)

    def bn(i, ch):
        gamma = 1.0 + 0.1 * jax.random.normal(ks[i], (ch,), jnp.float32)
        beta = 0.1 * jax.random.normal(ks[i + 1], (ch,), jnp.float32)
        mean = 0.1 * jax.random.normal(ks[i + 2], (ch,), jnp.float32)
        var = 1.0 + 0.1 * jnp.abs(jax.random.normal(ks[i + 3], (ch,), jnp.float32))
        return (gamma, beta, mean, var)

    return {
        # conv_bn_relu : 1x1 conv (3*in_ch -> in_ch) + BN(in_ch)
        "w1": 0.2 * jax.random.normal(ks[0], (in_ch, 3 * in_ch), jnp.float32),
        "b1": 0.1 * jax.random.normal(ks[1], (in_ch,), jnp.float32),
        "bn1": bn(2, in_ch),
        # outconv_bn_relu_L : 1x1 conv (in_ch -> out_ch) + BN(out_ch)
        "wl": 0.2 * jax.random.normal(ks[6], (out_ch, in_ch), jnp.float32),
        "bl": 0.1 * jax.random.normal(ks[7], (out_ch,), jnp.float32),
        "bnL": bn(8, out_ch),
        # outconv_bn_relu_H : 1x1 conv (in_ch -> out_ch) + BN(out_ch)
        "wh": 0.2 * jax.random.normal(ks[12], (out_ch, in_ch), jnp.float32),
        "bh": 0.1 * jax.random.normal(ks[13], (out_ch,), jnp.float32),
        "bnH": bn(14, out_ch),
    }


def fold_params(raw, *, eps=1e-5, compute_dtype=jnp.bfloat16):
    """Fold BN (eval), Haar analysis, 0.5 scale; merge x-sharing matmuls; pad."""
    in_ch = raw["wl"].shape[1]
    out_ch = raw["wl"].shape[0]
    mid_ch = raw["w1"].shape[0]
    C4 = 4 * in_ch
    C4p = _round_up(C4, 8)
    CMP = _round_up(mid_ch, 8)
    OCP = _round_up(out_ch, 8)

    def fold_bn(w, b, bn):
        gamma, beta, mean, var = bn
        scale = gamma / jnp.sqrt(var + eps)
        return w * scale[:, None], (b - mean) * scale + beta      # (Cout,Cin),(Cout,)

    w1f, b1f = fold_bn(raw["w1"], raw["b1"], raw["bn1"])          # (Cm, 3C)
    wlf, blf = fold_bn(raw["wl"], raw["bl"], raw["bnL"])          # (OC, C)
    whf, bhf = fold_bn(raw["wh"], raw["bh"], raw["bnH"])          # (OC, Cm)

    # Haar bands (zero mode, even sizes) from 2x2 polyphase samples:
    #   yL = 0.5*( x00 + x01 + x10 + x11)
    #   b0 = 0.5*( x00 + x01 - x10 - x11)
    #   b1 = 0.5*( x00 - x01 + x10 - x11)
    #   b2 = 0.5*( x00 - x01 - x10 + x11)
    w1a, w1b, w1c = w1f[:, :in_ch], w1f[:, in_ch:2 * in_ch], w1f[:, 2 * in_ch:]
    a00 = 0.5 * (w1a + w1b + w1c)
    a01 = 0.5 * (w1a - w1b - w1c)
    a10 = 0.5 * (-w1a + w1b - w1c)
    a11 = 0.5 * (-w1a - w1b + w1c)
    w1t = jnp.concatenate([a00, a01, a10, a11], axis=1)           # (Cm, 4C)
    wlt = jnp.tile(0.5 * wlf, (1, 4))                             # (OC, 4C)

    def pad2(a, rows, cols):
        r, c = a.shape
        return jnp.pad(a, ((0, rows - r), (0, cols - c)))

    wc = jnp.concatenate([pad2(w1t, CMP, C4p), pad2(wlt, OCP, C4p)], axis=0)
    bc = jnp.concatenate([jnp.pad(b1f, (0, CMP - mid_ch)),
                          jnp.pad(blf, (0, OCP - out_ch))])[:, None]
    wht = pad2(whf, OCP, CMP)
    bh = jnp.pad(bhf, (0, OCP - out_ch))[:, None]

    return {
        "wc": wc.astype(compute_dtype),     # (CMP+OCP, C4p)  MXU weight
        "bc": bc.astype(jnp.float32),       # (CMP+OCP, 1)
        "wht": wht.astype(compute_dtype),   # (OCP, CMP)      MXU weight
        "bh": bh.astype(jnp.float32),       # (OCP, 1)
    }


# --------------------------------------------------------------------------
# Pure-JAX NCHW reference (explicit Haar DWT + conv + BN(eval) + ReLU), f32.
# --------------------------------------------------------------------------
def ref_forward(x_nchw, raw, eps=1e-5):
    x00 = x_nchw[:, :, 0::2, 0::2]
    x01 = x_nchw[:, :, 0::2, 1::2]
    x10 = x_nchw[:, :, 1::2, 0::2]
    x11 = x_nchw[:, :, 1::2, 1::2]
    yL = 0.5 * (x00 + x01 + x10 + x11)
    b0 = 0.5 * (x00 + x01 - x10 - x11)
    b1 = 0.5 * (x00 - x01 + x10 - x11)
    b2 = 0.5 * (x00 - x01 - x10 + x11)
    yH = jnp.concatenate([b0, b1, b2], axis=1)

    def conv_bn_relu(inp, w, b, bn):
        gamma, beta, mean, var = bn
        y = jnp.einsum("oc,bchw->bohw", w, inp) + b[None, :, None, None]
        y = (y - mean[None, :, None, None]) / jnp.sqrt(var + eps)[None, :, None, None]
        y = y * gamma[None, :, None, None] + beta[None, :, None, None]
        return jnp.maximum(y, 0.0)

    h = conv_bn_relu(yH, raw["w1"], raw["b1"], raw["bn1"])
    yl = conv_bn_relu(yL, raw["wl"], raw["bl"], raw["bnL"])
    yh = conv_bn_relu(h, raw["wh"], raw["bh"], raw["bnH"])
    return yl + yh


if __name__ == "__main__":
    in_ch, out_ch = 4, 8
    B, H, W = 2, 16, 16

    key = jax.random.PRNGKey(0)
    kx, kp = jax.random.split(key)
    x = jax.random.normal(kx, (B, in_ch, H, W), jnp.float32)

    raw = make_params(in_ch, out_ch, kp)
    kparams = fold_params(raw)                      # bf16 MXU weights, f32 biases

    fwd = jax.jit(lambda xx: wtfd_forward(xx, kparams, out_ch))
    out = fwd(x)
    jax.block_until_ready(out)

    out_ref = ref_forward(x, raw)
    assert out.shape == (B, out_ch, H // 2, W // 2)
    out32 = out.astype(jnp.float32)
    err = float(jnp.max(jnp.abs(out32 - out_ref)))
    assert jnp.allclose(out32, out_ref, atol=5e-2, rtol=5e-2), f"max abs err {err}"

    print("KERNEL_OK")
</pallas_src>

<mosaic_0001>
module attributes {stable_mosaic.version = 11 : i64} {
  func.func @_wtfd_kernel(%arg0: i32, %arg1: i32, %arg2: memref<1x16x128xbf16, #tpu.memory_space<vmem>>, %arg3: memref<16x16xbf16, #tpu.memory_space<vmem>>, %arg4: memref<16x1xf32, #tpu.memory_space<vmem>>, %arg5: memref<8x8xbf16, #tpu.memory_space<vmem>>, %arg6: memref<8x1xf32, #tpu.memory_space<vmem>>, %arg7: memref<1x8x128xf32, #tpu.memory_space<vmem>>) attributes {dimension_semantics = [#tpu.dimension_semantics<parallel>, #tpu.dimension_semantics<parallel>], iteration_bounds = array<i64: 2, 1>, scalar_prefetch = 0 : i64, scratch_operands = 0 : i64, tpu.core_type = #tpu.core_type<tc>, window_params = [{transform_indices = @transform_0, window_bounds = array<i64: 1, 16, 128>}, {pipeline_mode = #tpu.pipeline_mode<synchronous>, transform_indices = @transform_1, window_bounds = array<i64: 16, 16>}, {pipeline_mode = #tpu.pipeline_mode<synchronous>, transform_indices = @transform_2, window_bounds = array<i64: 16, 1>}, {pipeline_mode = #tpu.pipeline_mode<synchronous>, transform_indices = @transform_3, window_bounds = array<i64: 8, 8>}, {pipeline_mode = #tpu.pipeline_mode<synchronous>, transform_indices = @transform_4, window_bounds = array<i64: 8, 1>}, {transform_indices = @transform_5, window_bounds = array<i64: 1, 8, 128>}]} {
    %c0 = arith.constant 0 : index
    %c0_0 = arith.constant 0 : index
    %c0_1 = arith.constant 0 : index
    %0 = vector.load %arg2[%c0, %c0_0, %c0_1] : memref<1x16x128xbf16, #tpu.memory_space<vmem>>, vector<1x16x128xbf16>
    %1 = vector.shape_cast %0 : vector<1x16x128xbf16> to vector<16x128xbf16>
    %c0_2 = arith.constant 0 : index
    %c0_3 = arith.constant 0 : index
    %2 = vector.load %arg3[%c0_2, %c0_3] : memref<16x16xbf16, #tpu.memory_space<vmem>>, vector<16x16xbf16>
    %cst = arith.constant dense<0.000000e+00> : vector<16x128xf32>
    %3 = tpu.matmul %2, %1, %cst {dimension_numbers = #tpu.dot_dimension_numbers<[1], [0], [0], [1], [0, 0, 1, 1], [], []>} : vector<16x16xbf16>, vector<16x128xbf16>, vector<16x128xf32> -> vector<16x128xf32>
    %c0_4 = arith.constant 0 : index
    %c0_5 = arith.constant 0 : index
    %4 = vector.load %arg4[%c0_4, %c0_5] : memref<16x1xf32, #tpu.memory_space<vmem>>, vector<16x1xf32>
    %5 = vector.broadcast %4 : vector<16x1xf32> to vector<16x128xf32>
    %6 = arith.addf %3, %5 : vector<16x128xf32>
    %cst_6 = arith.constant 0.000000e+00 : f32
    %7 = vector.broadcast %cst_6 : f32 to vector<16x128xf32>
    %8 = arith.maximumf %6, %7 : vector<16x128xf32>
    %9 = vector.extract_strided_slice %8 {offsets = [0, 0], sizes = [8, 128], strides = [1, 1]} : vector<16x128xf32> to vector<8x128xf32>
    %10 = arith.truncf %9 : vector<8x128xf32> to vector<8x128xbf16>
    %11 = vector.extract_strided_slice %8 {offsets = [8, 0], sizes = [8, 128], strides = [1, 1]} : vector<16x128xf32> to vector<8x128xf32>
    %c0_7 = arith.constant 0 : index
    %c0_8 = arith.constant 0 : index
    %12 = vector.load %arg5[%c0_7, %c0_8] : memref<8x8xbf16, #tpu.memory_space<vmem>>, vector<8x8xbf16>
    %cst_9 = arith.constant dense<0.000000e+00> : vector<8x128xf32>
    %13 = tpu.matmul %12, %10, %cst_9 {dimension_numbers = #tpu.dot_dimension_numbers<[1], [0], [0], [1], [0, 0, 1, 1], [], []>} : vector<8x8xbf16>, vector<8x128xbf16>, vector<8x128xf32> -> vector<8x128xf32>
    %c0_10 = arith.constant 0 : index
    %c0_11 = arith.constant 0 : index
    %14 = vector.load %arg6[%c0_10, %c0_11] : memref<8x1xf32, #tpu.memory_space<vmem>>, vector<8x1xf32>
    %15 = vector.broadcast %14 : vector<8x1xf32> to vector<8x128xf32>
    %16 = arith.addf %13, %15 : vector<8x128xf32>
    %cst_12 = arith.constant 0.000000e+00 : f32
    %17 = vector.broadcast %cst_12 : f32 to vector<8x128xf32>
    %18 = arith.maximumf %16, %17 : vector<8x128xf32>
    %19 = arith.addf %11, %18 : vector<8x128xf32>
    %c0_13 = arith.constant 0 : index
    %c0_14 = arith.constant 0 : index
    %c0_15 = arith.constant 0 : index
    %20 = vector.load %arg7[%c0_13, %c0_14, %c0_15] : memref<1x8x128xf32, #tpu.memory_space<vmem>>, vector<1x8x128xf32>
    %21 = vector.shape_cast %20 : vector<1x8x128xf32> to vector<8x128xf32>
    %22 = vector.shape_cast %19 : vector<8x128xf32> to vector<1x8x128xf32>
    tpu.vector_store %arg7[%c0_13, %c0_14, %c0_15], %22 {strides = array<i32>} : memref<1x8x128xf32, #tpu.memory_space<vmem>>, vector<1x8x128xf32>,
    return
  }
  func.func @transform_0(%arg0: i32, %arg1: i32) -> (i32, i32, i32) {
    %c0_i32 = arith.constant 0 : i32
    %c0_i32_0 = arith.constant 0 : i32
    return %arg0, %c0_i32, %arg1 : i32, i32, i32
  }
  func.func @transform_1(%arg0: i32, %arg1: i32) -> (i32, i32) {
    %c0_i32 = arith.constant 0 : i32
    %c0_i32_0 = arith.constant 0 : i32
    %c0_i32_1 = arith.constant 0 : i32
    return %c0_i32, %c0_i32_0 : i32, i32
  }
  func.func @transform_2(%arg0: i32, %arg1: i32) -> (i32, i32) {
    %c0_i32 = arith.constant 0 : i32
    %c0_i32_0 = arith.constant 0 : i32
    %c0_i32_1 = arith.constant 0 : i32
    return %c0_i32, %c0_i32_0 : i32, i32
  }
  func.func @transform_3(%arg0: i32, %arg1: i32) -> (i32, i32) {
    %c0_i32 = arith.constant 0 : i32
    %c0_i32_0 = arith.constant 0 : i32
    %c0_i32_1 = arith.constant 0 : i32
    return %c0_i32, %c0_i32_0 : i32, i32
  }
  func.func @transform_4(%arg0: i32, %arg1: i32) -> (i32, i32) {
    %c0_i32 = arith.constant 0 : i32
    %c0_i32_0 = arith.constant 0 : i32
    %c0_i32_1 = arith.constant 0 : i32
    return %c0_i32, %c0_i32_0 : i32, i32
  }
  func.func @transform_5(%arg0: i32, %arg1: i32) -> (i32, i32, i32) {
    %c0_i32 = arith.constant 0 : i32
    %c0_i32_0 = arith.constant 0 : i32
    return %arg0, %c0_i32, %arg1 : i32, i32, i32
  }
}

</mosaic_0001>

<llo_original>
// kernel: _lambda_.2
$region0: #{_lambda_.2}
  #allocation0 [shape = 'u32[]', space=smem, size = 0x4, offset = 0x4, fixed_abs, tag = 'smem constant byte address 0x4 - core index']
  #allocation1 [shape = 'u32[144,128]{1,0:T(1,128)}', space=vmem, size = 0x12000, scoped, tag = 'internal scratch']
  #allocation2 [shape = 'u32[2048]{0}', space=vmem, size = 0x2000, scoped, tag = 'scoped memory for _lambda_.2']
  #allocation3 [shape = 'u32[2048]{0}', space=vmem, size = 0x2000, scoped, tag = 'scoped memory for _lambda_.2']
  #allocation4 [shape = 'u32[2048]{0}', space=vmem, size = 0x2000, scoped, tag = 'scoped memory for _lambda_.2']
  #allocation5 [shape = 'u32[2048]{0}', space=vmem, size = 0x2000, scoped, tag = 'scoped memory for _lambda_.2']
  #allocation6 [shape = 'u32[2048]{0}', space=vmem, size = 0x2000, scoped, tag = 'scoped memory for _lambda_.2']
  %s0 = inlined_call_operand.vmem [shape: bf16[16,16], index: 0, kind: input, shape index: {}]
  %s1 = inlined_call_operand.vmem [shape: f32[16,1], index: 1, kind: input, shape index: {}]
  %s2 = inlined_call_operand.vmem [shape: bf16[8,8], index: 2, kind: input, shape index: {}]
  %s3 = inlined_call_operand.vmem [shape: f32[8,1], index: 3, kind: input, shape index: {}]
  %s4 = inlined_call_operand.vmem [shape: bf16[2,16,64], index: 4, kind: input, shape index: {}]
  %s5 = inlined_call_operand.<no memory space> [shape: bf16[], index: 5, kind: input, shape index: {}]
  %s6 = inlined_call_operand.vmem [shape: f32[2,8,128], index: 6, kind: output, shape index: {}]
  %s7 = sld [smem:[#allocation0]]
  $region53: #{_lambda_.2} parent=0
    _
  %s9 = ssub.s32 1, %s7
  %s10 = scalar_select 0, %s9, %s7
  %v11 = vstv %s5
  %v12 = vunpack.i.l.bf16 %v11
  %v14 = vunpack.i.h.bf16 %v11
  loop: start=0, step=1, limit=4
  $region2: #{_lambda_.2} parent=0 // loop_pre_header
    _
  $region3: #{_lambda_.2} parent=0 // loop_header
    %s17 = sphi 0, %s21
    %p18 = scmp.ge.s32.totalorder %s17, 4
    %s24 = sphi 0, %s36
    %s25 = sphi 0, %s32
    %s26 = sphi 0, %s24
    %s27 = sphi 0, %s25
    %s28 = sphi 0, %s26
    %s29 = sphi 0, %s27
    %s41 = sphi 0, %s43
    %s44 = sphi 0, %s41
    %s45 = sphi 0, %s44
    %s61 = sphi 0, %s45
    %s65 = sphi 0, %s65
    %s67 = sphi 0, %s65
    %s68 = sphi 0, %s67
    %s82 = sphi 0, %s68
    %s86 = sphi 0, %s86
    %s88 = sphi 0, %s86
    %s89 = sphi 0, %s88
    %s103 = sphi 0, %s89
    %s107 = sphi 0, %s107
    %s109 = sphi 0, %s107
    %s110 = sphi 0, %s109
    %s124 = sphi 0, %s110
    %s128 = sphi 0, %s128
    %s130 = sphi 0, %s128
    %s131 = sphi 0, %s130
    %s145 = sphi 0, %s131
    %s153 = sphi 0, %s155
    %s156 = sphi 0, %s153
    %s157 = sphi 0, %s156
    %s173 = sphi 0, %s157
  $region4: #{_lambda_.2} parent=0 // loop_header_branch
    %20 = sbr.rel (%p18) target = $region8
  $region5: #{_lambda_.2} parent=0 // loop_body
    %s22 = ssub.s32 %s17, 1
    %s23 = ssub.s32 %s17, 2
    %s30 = sadd.s32 1, %s25
    %p31 = scmp.ge.s32.totalorder %s30, 1
    %s32 = scalar_select %p31, 0, %s30
    %s33 = sadd.s32 1, %s24
    %s34 = scalar_select %p31, %s33, %s24
    %p35 = scmp.ge.s32.totalorder %s34, 2
    %s36 = scalar_select %p35, 0, %s34
    %s37 = ssub.s32 %s24, %s36
    %s38 = ssub.s32 %s25, %s32
    %s39 = sor.u32 %s37, %s38
    %p40 = scmp.eq.s32.totalorder %s39, 0
    %s42 = sadd.s32 %s41, 1
    %s43 = scalar_select %p40, %s41, %s42
    %p46 = pneg %p40
    %p47 = scmp.eq.s32.totalorder %s17, 1
    %p48 = por %p46, %p47
    %p49 = scmp.ne.s32.totalorder %s41, %s44
    %p50 = scmp.eq.s32.totalorder %s17, 0
    %p51 = por %p49, %p50
    %p52 = scmp.ne.s32.totalorder %s41, %s44
    %p53 = scmp.eq.s32.totalorder %s22, 1
    %p54 = por %p52, %p53
    %p55 = scmp.ne.s32.totalorder %s44, %s45
    %p56 = scmp.eq.s32.totalorder %s22, 0
    %p57 = por %p55, %p56
    %p58 = scmp.ne.s32.totalorder %s44, %s45
    %p59 = scmp.eq.s32.totalorder %s23, 1
    %p60 = por %p58, %p59
    %p62 = scmp.ne.s32.totalorder %s45, %s61
    %p63 = scmp.eq.s32.totalorder %s23, 0
    %p64 = por %p62, %p63
    %s66 = sadd.s32 %s65, 1
    %p69 = scmp.eq.s32.totalorder %s17, 1
    %p70 = scmp.ne.s32.totalorder %s65, %s67
    %p71 = scmp.eq.s32.totalorder %s17, 0
    %p72 = por %p70, %p71
    %p73 = scmp.ne.s32.totalorder %s65, %s67
    %p74 = scmp.eq.s32.totalorder %s22, 1
    %p75 = por %p73, %p74
    %p76 = scmp.ne.s32.totalorder %s67, %s68
    %p77 = scmp.eq.s32.totalorder %s22, 0
    %p78 = por %p76, %p77
    %p79 = scmp.ne.s32.totalorder %s67, %s68
    %p80 = scmp.eq.s32.totalorder %s23, 1
    %p81 = por %p79, %p80
    %p83 = scmp.ne.s32.totalorder %s68, %s82
    %p84 = scmp.eq.s32.totalorder %s23, 0
    %p85 = por %p83, %p84
    %s87 = sadd.s32 %s86, 1
    %p90 = scmp.eq.s32.totalorder %s17, 1
    %p91 = scmp.ne.s32.totalorder %s86, %s88
    %p92 = scmp.eq.s32.totalorder %s17, 0
    %p93 = por %p91, %p92
    %p94 = scmp.ne.s32.totalorder %s86, %s88
    %p95 = scmp.eq.s32.totalorder %s22, 1
    %p96 = por %p94, %p95
    %p97 = scmp.ne.s32.totalorder %s88, %s89
    %p98 = scmp.eq.s32.totalorder %s22, 0
    %p99 = por %p97, %p98
    %p100 = scmp.ne.s32.totalorder %s88, %s89
    %p101 = scmp.eq.s32.totalorder %s23, 1
    %p102 = por %p100, %p101
    %p104 = scmp.ne.s32.totalorder %s89, %s103
    %p105 = scmp.eq.s32.totalorder %s23, 0
    %p106 = por %p104, %p105
    %s108 = sadd.s32 %s107, 1
    %p111 = scmp.eq.s32.totalorder %s17, 1
    %p112 = scmp.ne.s32.totalorder %s107, %s109
    %p113 = scmp.eq.s32.totalorder %s17, 0
    %p114 = por %p112, %p113
    %p115 = scmp.ne.s32.totalorder %s107, %s109
    %p116 = scmp.eq.s32.totalorder %s22, 1
    %p117 = por %p115, %p116
    %p118 = scmp.ne.s32.totalorder %s109, %s110
    %p119 = scmp.eq.s32.totalorder %s22, 0
    %p120 = por %p118, %p119
    %p121 = scmp.ne.s32.totalorder %s109, %s110
    %p122 = scmp.eq.s32.totalorder %s23, 1
    %p123 = por %p121, %p122
    %p125 = scmp.ne.s32.totalorder %s110, %s124
    %p126 = scmp.eq.s32.totalorder %s23, 0
    %p127 = por %p125, %p126
    %s129 = sadd.s32 %s128, 1
    %p132 = scmp.eq.s32.totalorder %s17, 1
    %p133 = scmp.ne.s32.totalorder %s128, %s130
    %p134 = scmp.eq.s32.totalorder %s17, 0
    %p135 = por %p133, %p134
    %p136 = scmp.ne.s32.totalorder %s128, %s130
    %p137 = scmp.eq.s32.totalorder %s22, 1
    %p138 = por %p136, %p137
    %p139 = scmp.ne.s32.totalorder %s130, %s131
    %p140 = scmp.eq.s32.totalorder %s22, 0
    %p141 = por %p139, %p140
    %p142 = scmp.ne.s32.totalorder %s130, %s131
    %p143 = scmp.eq.s32.totalorder %s23, 1
    %p144 = por %p142, %p143
    %p146 = scmp.ne.s32.totalorder %s131, %s145
    %p147 = scmp.eq.s32.totalorder %s23, 0
    %p148 = por %p146, %p147
    %s149 = ssub.s32 %s24, %s36
    %s150 = ssub.s32 %s25, %s32
    %s151 = sor.u32 %s149, %s150
    %p152 = scmp.eq.s32.totalorder %s151, 0
    %s154 = sadd.s32 %s153, 1
    %s155 = scalar_select %p152, %s153, %s154
    %p158 = pneg %p152
    %p159 = scmp.eq.s32.totalorder %s17, 1
    %p160 = por %p158, %p159
    %p161 = scmp.ne.s32.totalorder %s153, %s156
    %p162 = scmp.eq.s32.totalorder %s17, 0
    %p163 = por %p161, %p162
    %p164 = scmp.ne.s32.totalorder %s153, %s156
    %p165 = scmp.eq.s32.totalorder %s22, 1
    %p166 = por %p164, %p165
    %p167 = scmp.ne.s32.totalorder %s156, %s157
    %p168 = scmp.eq.s32.totalorder %s22, 0
    %p169 = por %p167, %p168
    %p170 = scmp.ne.s32.totalorder %s156, %s157
    %p171 = scmp.eq.s32.totalorder %s23, 1
    %p172 = por %p170, %p171
    %p174 = scmp.ne.s32.totalorder %s157, %s173
    %p175 = scmp.eq.s32.totalorder %s23, 0
    %p176 = por %p174, %p175
    %p177 = scmp.le.s32.totalorder 1, %s17
    %p178 = scmp.lt.s32.totalorder %s17, 3
    %p179 = pnand %p177, %p178
    %p180 = pneg %p179
    // Predicated region
    $region9: #{_lambda_.2} parent=5 // pred_check
      _
    $region10: #{_lambda_.2} parent=5 // pred_check_branch
      %182 = sbr.rel (%p179) target = $region12
    $region11: #{_lambda_.2} parent=5 // pred_region
      %s183 = ssub.s32 %s17, 1
      // Predicated region
      $region13: #{_lambda_.2} parent=11 // pred_check
        %p184 = pneg %p78
      $region14: #{_lambda_.2} parent=11 // pred_check_branch
        %186 = sbr.rel (%p184) target = $region16
      $region15: #{_lambda_.2} parent=11 // pred_region
        _
      $region16: #{_lambda_.2} parent=11 // pred_fallthru
        _
      // Predicated region
      $region17: #{_lambda_.2} parent=11 // pred_check
        %p187 = pneg %p99
      $region18: #{_lambda_.2} parent=11 // pred_check_branch
        %189 = sbr.rel (%p187) target = $region20
      $region19: #{_lambda_.2} parent=11 // pred_region
        _
      $region20: #{_lambda_.2} parent=11 // pred_fallthru
        _
      // Predicated region
      $region21: #{_lambda_.2} parent=11 // pred_check
        %p190 = pneg %p120
      $region22: #{_lambda_.2} parent=11 // pred_check_branch
        %192 = sbr.rel (%p190) target = $region24
      $region23: #{_lambda_.2} parent=11 // pred_region
        _
      $region24: #{_lambda_.2} parent=11 // pred_fallthru
        _
      // Predicated region
      $region25: #{_lambda_.2} parent=11 // pred_check
        %p193 = pneg %p141
      $region26: #{_lambda_.2} parent=11 // pred_check_branch
        %195 = sbr.rel (%p193) target = $region28
      $region27: #{_lambda_.2} parent=11 // pred_region
        _
      $region28: #{_lambda_.2} parent=11 // pred_fallthru
        _
    $region12: #{_lambda_.2} parent=5 // pred_fallthru
      _
    %p196 = scmp.lt.s32.totalorder %s17, 2
    // Predicated region
    $region29: #{_lambda_.2} parent=5 // pred_check
      %p197 = pneg %p196
    $region30: #{_lambda_.2} parent=5 // pred_check_branch
      %199 = sbr.rel (%p197) target = $region32
    $region31: #{_lambda_.2} parent=5 // pred_region
      // Predicated region
      $region33: #{_lambda_.2} parent=31 // pred_check
        %p200 = pneg %p51
      $region34: #{_lambda_.2} parent=31 // pred_check_branch
        %202 = sbr.rel (%p200) target = $region36
      $region35: #{_lambda_.2} parent=31 // pred_region
        %s203 = ssub.s32 1, %s25
        %s204 = smul.u32 128, %s203
        %p205 = scmp.lt.s32.totalorder %s24, 1
        %s206 = scalar_select %p205, %s24, 1
        %p207 = scmp.lt.s32.totalorder %s25, 0
        %s208 = scalar_select %p207, %s25, 0
        %s209 = smul.addr %s206, 2
        %s210 = sadd.s32 %s208, %s209
        %s211 = smul.addr %s210, 4
        %s212 = scalar_lea.vmem %s4, %s211
        %s213 = ssub.s32 1, %s25
        %s214 = smul.u32 128, %s213
      $region36: #{_lambda_.2} parent=31 // pred_fallthru
        _
    $region32: #{_lambda_.2} parent=5 // pred_fallthru
      _
    %p215 = scmp.le.s32.totalorder 1, %s17
    %p216 = scmp.lt.s32.totalorder %s17, 3
    %p217 = pnand %p215, %p216
    %p218 = pneg %p217
    // Predicated region
    $region37: #{_lambda_.2} parent=5 // pred_check
      _
    $region38: #{_lambda_.2} parent=5 // pred_check_branch
      %220 = sbr.rel (%p217) target = $region40
    $region39: #{_lambda_.2} parent=5 // pred_region
      #allocation7 [shape = 'u8[4096]{0}', space=vmem, size = 0x1000, dematerialized = true, scoped, tag = 'FusionAdapter Buffer %fusion.1 = bf16[2,16,128]{2,1,0:T(8,128)(2,1)} fusion(%param_4.1, %param_5), kind=kLoop, calls=%fused_computation.1.clone, metadata={op_name="jit(<lambda>)/jit(_pad)/pad" stack_frame_id=12}']
      %s221 = ssub.s32 %s17, 1
      %s222 = ssub.s32 1, %s27
      %s223 = smul.u32 128, %s222
      %p224 = scmp.lt.s32.totalorder %s26, 1
      %s225 = scalar_select %p224, %s26, 1
      %p226 = scmp.lt.s32.totalorder %s27, 0
      %s227 = scalar_select %p226, %s27, 0
      %s228 = smul.addr %s225, 2
      %s229 = sadd.s32 %s227, %s228
      %s230 = smul.addr %s229, 4
      %s231 = scalar_lea.vmem %s4, %s230
      %p232 = pneg %p57
      %p233 = pneg %p54
      %p234 = pneg %p78
      %p235 = pneg %p75
      %p236 = pneg %p99
      %p237 = pneg %p96
      %p238 = pneg %p120
      %p239 = pneg %p117
      %p240 = pneg %p141
      %p241 = pneg %p138
      %p242 = pneg %p169
      %p243 = pneg %p166
      %p244 = scmp.lt.s32.totalorder %s26, 1
      %s245 = scalar_select %p244, %s26, 1
      %p246 = scmp.lt.s32.totalorder %s27, 0
      %s247 = scalar_select %p246, %s27, 0
      %s248 = sadd.s32 %s247, %s245
      %s249 = smul.addr %s248, 8
      %s250 = scalar_lea.vmem %s6, %s249
      %s251 = ssub.s32 1, %s27
      %s252 = smul.u32 128, %s251
      %p253 = scmp.lt.s32.totalorder %s26, 1
      %s254 = scalar_select %p253, %s26, 1
      %p255 = scmp.lt.s32.totalorder %s27, 0
      %s256 = scalar_select %p255, %s27, 0
      %s257 = smul.addr %s254, 2
      %s258 = sadd.s32 %s256, %s257
      %s259 = smul.addr %s258, 4
      %s260 = scalar_lea.vmem %s4, %s259
      %s261 = ssub.s32 1, %s27
      %s262 = smul.u32 128, %s261
      %p263 = scmp.lt.s32.totalorder %s26, 1
      %s264 = scalar_select %p263, %s26, 1
      %p265 = scmp.lt.s32.totalorder %s27, 0
      %s266 = scalar_select %p265, %s27, 0
      %s267 = sadd.s32 %s266, %s264
      %s268 = smul.addr %s267, 8
      %s269 = scalar_lea.vmem %s6, %s268
      %s270 = ssub.s32 0, %s27
      %p271 = scmp.lt.s32.totalorder %s270, 0
      %s272 = scalar_select %p271, 0, 255
      %s273 = sshrl.u32 %s272, 1
      %s274 = sor.u32 %s272, %s273
      %s275 = sand.u32 %s274, 85
      %s276 = sshrl.u32 %s275, 1
      %s277 = sor.u32 %s275, %s276
      %s278 = sand.u32 51, %s277
      %s279 = sshrl.u32 %s278, 2
      %s280 = sor.u32 %s278, %s279
      %s281 = sand.u32 15, %s280
      %v282 = vld [vmem:[%s260] sm:%s281]
      %v283 = vunpack.c.l.bf16 %v282
      %v284 = vunpack.c.h.bf16 %v282
      %s285 = ssub.s32 0, %s27
      %v286 = vstv %s285
      %vm287 = vcmp.lt.s32.totalorder %v286, 0
      %v288 = vsel %vm287, %v12, %v283
      %s289 = smul.addr %s27, 128
      %v290 = vlaneseq
      %v291 = vand.u32 %v290, 127
      %v292 = vstv %s289
      %v293 = vadd.s32 %v291, %v292
      %vm294 = vcmp.lt.s32.totalorder %v293, 64
      %v295 = vsel %vm294, %v288, %v12
      %v296 = vpack.c.bf16 0.0, %v295
      %298 = vst [vmem:[#allocation7] sm:$0xf] %v296
      %s299 = scalar_lea.vmem %s260, 4
      %s300 = ssub.s32 0, %s27
      %p301 = scmp.lt.s32.totalorder %s300, 0
      %s302 = scalar_select %p301, 0, 255
      %s303 = sshrl.u32 %s302, 1
      %s304 = sor.u32 %s302, %s303
      %s305 = sand.u32 %s304, 85
      %s306 = sshrl.u32 %s305, 1
      %s307 = sor.u32 %s305, %s306
      %s308 = sand.u32 51, %s307
      %s309 = sshrl.u32 %s308, 2
      %s310 = sor.u32 %s308, %s309
      %s311 = sand.u32 15, %s310
      %v312 = vld [vmem:[%s299] sm:%s311]
      %v313 = vunpack.c.l.bf16 %v312
      %v314 = vunpack.c.h.bf16 %v312
      %s315 = ssub.s32 0, %s27
      %v316 = vstv %s315
      %vm317 = vcmp.lt.s32.totalorder %v316, 0
      %v318 = vsel %vm317, %v12, %v313
      %s319 = smul.addr %s27, 128
      %v320 = vlaneseq
      %v321 = vand.u32 %v320, 127
      %v322 = vstv %s319
      %v323 = vadd.s32 %v321, %v322
      %vm324 = vcmp.lt.s32.totalorder %v323, 64
      %v325 = vsel %vm324, %v318, %v12
      %s326 = scalar_lea.vmem [#allocation7], 4
      %v327 = vpack.c.bf16 0.0, %v325
      %329 = vst [vmem:[%s326] sm:$0xf] %v327
      %v331 = vld [vmem:[#allocation7] sm:$0xf]
      %v332 = vld [vmem:[#allocation7 + $0x4] sm:$0xf]
      %v333 = vld [vmem:[%s0] sm:$0xff]
      %v334 = vld [vmem:[%s1] sm:$0xff]
      %v335 = vld [vmem:[%s1 + $0x8] sm:$0xff]
      %337 = vset.pattern.permute.xlu0 0
      %338 = vperm.xlu0 %337, %v334
      %v339 = vpop.permute.xlu0 %338
      %342 = vset.pattern.permute.xlu0 0
      %343 = vperm.xlu0 %342, %v335
      %v344 = vpop.permute.xlu0 %343
      %v348 = vunpack.c.l.b16 %v331
      %v349 = vunpack.c.l.b16 %v332
      %v350 = vpack.c.b16 %v349, %v348
      %vm352 = vcmask 130048
      %v354 = vsel %vm352, %v333, 0
      %356 = vmatprep.subr.bf16.mxu0 0
      %357 = vmatpush1.bf16.msra.mxu0 %v350
      %358 = vmatprep.subr.bf16.mxu0 0
      %359 = vmatpush1.bf16.msra.mxu0 0
      %360 = vmatprep.subr.bf16.mxu0 0
      %361 = vmatpush1.bf16.msra.mxu0 0
      %362 = vmatprep.subr.bf16.mxu0 0
      %363 = vmatpush1.bf16.msra.mxu0 0
      %364 = vmatprep.subr.bf16.mxu0 0
      %365 = vmatpush1.bf16.msra.mxu0 0
      %366 = vmatprep.subr.bf16.mxu0 0
      %367 = vmatpush1.bf16.msra.mxu0 0
      %368 = vmatprep.subr.bf16.mxu0 0
      %369 = vmatpush1.bf16.msra.mxu0 0
      %370 = vmatprep.subr.bf16.mxu0 0
      %371 = vmatpush1.bf16.msra.mxu0 0
      %372 = vmatprep.subr.bf16.mxu0 0
      %373 = vmatpush1.bf16.msra.mxu0 0
      %374 = vmatprep.subr.bf16.mxu0 0
      %375 = vmatpush1.bf16.msra.mxu0 0
      %376 = vmatprep.subr.bf16.mxu0 0
      %377 = vmatpush1.bf16.msra.mxu0 0
      %378 = vmatprep.subr.bf16.mxu0 0
      %379 = vmatpush1.bf16.msra.mxu0 0
      %380 = vmatprep.subr.bf16.mxu0 0
      %381 = vmatpush1.bf16.msra.mxu0 0
      %382 = vmatprep.subr.bf16.mxu0 0
      %383 = vmatpush1.bf16.msra.mxu0 0
      %384 = vmatprep.subr.bf16.mxu0 0
      %385 = vmatpush1.bf16.msra.mxu0 0
      %386 = vmatprep.subr.bf16.mxu0 0
      %387 = vmatpush1.bf16.msra.mxu0 0
      %388 = vmatprep.mubr.bf16.mxu0 0
      %389 = vmatmul.mubr.bf16.gmra.mrb[0].mxu0 %v354
      %v390 = vpop.f32.mrb[0].mxu0
      %v391 = vadd.f32 %v339, %v390
      %v392 = vpop.f32.mrb[0].mxu0
      %v393 = vpop.f32.mrb[0].mxu0
      %v394 = vadd.f32 %v344, %v393
      %v395 = vpop.f32.mrb[0].mxu0
      %396 = vdwg.mxu0
      %v397 = vmax.f32 %v391, 0.0
      %v398 = vmax.f32 %v394, 0.0
      %v399 = vpack.c.bf16 %v397, %v397
      %v400 = vld [vmem:[%s2] sm:$0xf]
      %v401 = vld [vmem:[%s3] sm:$0xff]
      %403 = vset.pattern.permute.xlu0 0
      %404 = vperm.xlu0 %403, %v401
      %v405 = vpop.permute.xlu0 %404
      %vm407 = vcmask 64512
      %v409 = vsel %vm407, %v400, 0
      %vm411 = vcmask 1043456
      %v413 = vsel %vm411, %v399, 0
      %415 = vmatprep.subr.bf16.mxu0 0
      %416 = vmatpush1.bf16.msra.mxu0 %v413
      %417 = vmatprep.subr.bf16.mxu0 0
      %418 = vmatpush1.bf16.msra.mxu0 0
      %419 = vmatprep.subr.bf16.mxu0 0
      %420 = vmatpush1.bf16.msra.mxu0 0
      %421 = vmatprep.subr.bf16.mxu0 0
      %422 = vmatpush1.bf16.msra.mxu0 0
      %423 = vmatprep.subr.bf16.mxu0 0
      %424 = vmatpush1.bf16.msra.mxu0 0
      %425 = vmatprep.subr.bf16.mxu0 0
      %426 = vmatpush1.bf16.msra.mxu0 0
      %427 = vmatprep.subr.bf16.mxu0 0
      %428 = vmatpush1.bf16.msra.mxu0 0
      %429 = vmatprep.subr.bf16.mxu0 0
      %430 = vmatpush1.bf16.msra.mxu0 0
      %431 = vmatprep.subr.bf16.mxu0 0
      %432 = vmatpush1.bf16.msra.mxu0 0
      %433 = vmatprep.subr.bf16.mxu0 0
      %434 = vmatpush1.bf16.msra.mxu0 0
      %435 = vmatprep.subr.bf16.mxu0 0
      %436 = vmatpush1.bf16.msra.mxu0 0
      %437 = vmatprep.subr.bf16.mxu0 0
      %438 = vmatpush1.bf16.msra.mxu0 0
      %439 = vmatprep.subr.bf16.mxu0 0
      %440 = vmatpush1.bf16.msra.mxu0 0
      %441 = vmatprep.subr.bf16.mxu0 0
      %442 = vmatpush1.bf16.msra.mxu0 0
      %443 = vmatprep.subr.bf16.mxu0 0
      %444 = vmatpush1.bf16.msra.mxu0 0
      %445 = vmatprep.subr.bf16.mxu0 0
      %446 = vmatpush1.bf16.msra.mxu0 0
      %447 = vmatprep.mubr.bf16.mxu0 0
      %448 = vmatmul.mubr.bf16.gmra.mrb[0].mxu0 %v409
      %v449 = vpop.f32.mrb[0].mxu0
      %v450 = vadd.f32 %v405, %v449
      %v451 = vpop.f32.mrb[0].mxu0
      %v452 = vpop.f32.mrb[0].mxu0
      %v453 = vpop.f32.mrb[0].mxu0
      %454 = vdwg.mxu0
      %v455 = vmax.f32 %v450, 0.0
      %v456 = vadd.f32 %v398, %v455
      %457 = vst [vmem:[%s269] sm:$0xff] %v456
      %p458 = scmp.lt.s32.totalorder %s26, 1
      %s459 = scalar_select %p458, %s26, 1
      %p460 = scmp.lt.s32.totalorder %s27, 0
      %s461 = scalar_select %p460, %s27, 0
      %s462 = sadd.s32 %s461, %s459
      %s463 = smul.addr %s462, 8
      %s464 = scalar_lea.vmem %s6, %s463
      // Predicated region
      $region41: #{_lambda_.2} parent=39 // pred_check
        %p465 = pneg %p166
      $region42: #{_lambda_.2} parent=39 // pred_check_branch
        %467 = sbr.rel (%p465) target = $region44
      $region43: #{_lambda_.2} parent=39 // pred_region
        _
      $region44: #{_lambda_.2} parent=39 // pred_fallthru
        _
    $region40: #{_lambda_.2} parent=5 // pred_fallthru
      _
    %p468 = scmp.le.s32.totalorder 2, %s17
    // Predicated region
    $region45: #{_lambda_.2} parent=5 // pred_check
      %p469 = pneg %p468
    $region46: #{_lambda_.2} parent=5 // pred_check_branch
      %471 = sbr.rel (%p469) target = $region48
    $region47: #{_lambda_.2} parent=5 // pred_region
      %s472 = ssub.s32 %s17, 2
      // Predicated region
      $region49: #{_lambda_.2} parent=47 // pred_check
        %p473 = pneg %p172
      $region50: #{_lambda_.2} parent=47 // pred_check_branch
        %475 = sbr.rel (%p473) target = $region52
      $region51: #{_lambda_.2} parent=47 // pred_region
        %p476 = scmp.lt.s32.totalorder %s28, 1
        %s477 = scalar_select %p476, %s28, 1
        %p478 = scmp.lt.s32.totalorder %s29, 0
        %s479 = scalar_select %p478, %s29, 0
        %s480 = sadd.s32 %s479, %s477
        %s481 = smul.addr %s480, 8
        %s482 = scalar_lea.vmem %s6, %s481
      $region52: #{_lambda_.2} parent=47 // pred_fallthru
        _
    $region48: #{_lambda_.2} parent=5 // pred_fallthru
      _
  $region6: #{_lambda_.2} parent=0 // loop_footer
    %s21 = sadd.s32 1, %s17
  $region7: #{_lambda_.2} parent=0 // loop_footer_branch
    %16 = sbr.rel target = $region3
  $region8: #{_lambda_.2} parent=0 // loop_exit
    _

</llo_original>
